<compile_context>
chip_gen: v7x
topology: tpu7x:2x2x1
jax: 0.10.0
libtpu: 0.0.40
codegen_flags: <defaults>
</compile_context>

<pallas_src>
import functools
import math

import jax
import jax.numpy as jnp
from jax import lax
from jax.experimental import pallas as pl
from jax.experimental.pallas import tpu as pltpu


# ---------------------------------------------------------------------------
# Fused kernel: dense + bias + dropout + residual + LayerNorm for a row tile.
# ---------------------------------------------------------------------------
def _self_output_kernel(seed_ref, x_ref, w_ref, b_ref, res_ref, g_ref, beta_ref,
                        o_ref, *, eps, dropout_rate, deterministic):
    # dense(hidden_states): x @ W^T + b  (W already transposed in the wrapper)
    h = jnp.dot(x_ref[...], w_ref[...], preferred_element_type=jnp.float32)
    h = h + b_ref[...].astype(jnp.float32)

    if (not deterministic) and dropout_rate > 0.0:
        # TODO(synk): TPU hardware PRNG; will not bitwise-match torch dropout RNG.
        pltpu.prng_seed(seed_ref[0] + pl.program_id(0))
        bits = pltpu.bitcast(pltpu.prng_random_bits(h.shape), jnp.uint32)
        u = (bits >> 8).astype(jnp.float32) * (1.0 / (1 << 24))     # U[0, 1)
        keep = (u >= dropout_rate).astype(jnp.float32)
        h = h * keep * (1.0 / (1.0 - dropout_rate))

    # LayerNorm(hidden_states + input_tensor)
    x = h + res_ref[...].astype(jnp.float32)
    mu = jnp.mean(x, axis=-1, keepdims=True)
    xc = x - mu
    var = jnp.mean(xc * xc, axis=-1, keepdims=True)
    inv = lax.rsqrt(var + eps)                      # EUP, keeps VALU slots free
    y = xc * inv * g_ref[...].astype(jnp.float32) + beta_ref[...].astype(jnp.float32)
    o_ref[...] = y.astype(o_ref.dtype)


# ---------------------------------------------------------------------------
# Wrapper: flatten (B, S, H) -> (M, H), tile rows, call the kernel once.
# ---------------------------------------------------------------------------
def paperlm_self_output(hidden_states, input_tensor, weight, bias, gamma, beta,
                        *, eps=1e-12, dropout_rate=0.0, deterministic=True,
                        seed=0, block_rows=256):
    orig_shape = hidden_states.shape
    h_dim = orig_shape[-1]
    assert weight.shape == (h_dim, h_dim)

    x = hidden_states.reshape(-1, h_dim)
    res = input_tensor.reshape(-1, h_dim)
    m = x.shape[0]

    # Row tiling: a single full-extent block for small M, otherwise 8-aligned
    # tiles of `block_rows` rows (pad the tail so the grid divides evenly).
    if m <= block_rows:
        tm, m_pad = m, m
    else:
        assert block_rows % 8 == 0, "block_rows must be a multiple of 8"
        tm = block_rows
        m_pad = -(-m // tm) * tm
        if m_pad != m:
            pad = ((0, m_pad - m), (0, 0))
            x = jnp.pad(x, pad)
            res = jnp.pad(res, pad)

    w_t = weight.T                        # nn.Linear stores (out, in)
    b2 = bias.reshape(1, h_dim)
    g2 = gamma.reshape(1, h_dim)
    bt2 = beta.reshape(1, h_dim)
    seed_arr = jnp.asarray([seed], dtype=jnp.int32)

    kernel = functools.partial(_self_output_kernel,
                               eps=float(eps),
                               dropout_rate=float(dropout_rate),
                               deterministic=bool(deterministic))

    out = pl.pallas_call(
        kernel,
        out_shape=jax.ShapeDtypeStruct((m_pad, h_dim), hidden_states.dtype),
        grid_spec=pltpu.PrefetchScalarGridSpec(
            num_scalar_prefetch=1,                      # dropout seed -> SMEM
            grid=(m_pad // tm,),
            in_specs=[
                pl.BlockSpec((tm, h_dim), lambda i, seed: (i, 0)),     # x rows
                pl.BlockSpec((h_dim, h_dim), lambda i, seed: (0, 0)),  # W^T (resident)
                pl.BlockSpec((1, h_dim), lambda i, seed: (0, 0)),      # bias
                pl.BlockSpec((tm, h_dim), lambda i, seed: (i, 0)),     # residual rows
                pl.BlockSpec((1, h_dim), lambda i, seed: (0, 0)),      # gamma
                pl.BlockSpec((1, h_dim), lambda i, seed: (0, 0)),      # beta
            ],
            out_specs=pl.BlockSpec((tm, h_dim), lambda i, seed: (i, 0)),
        ),
        compiler_params=pltpu.CompilerParams(
            dimension_semantics=("parallel",)),         # rows independent -> 2 TCs on v7x
    )(seed_arr, x, w_t, b2, res, g2, bt2)

    if m_pad != m:
        out = out[:m]
    return out.reshape(orig_shape)


if __name__ == "__main__":
    # Small, deterministic shapes consistent with the module's forward.
    B, S, H = 2, 128, 256                 # M = 256 rows, H lane-aligned (2 * 128)
    EPS = 1e-12

    key = jax.random.PRNGKey(0)
    k0, k1, k2, k3, k4, k5 = jax.random.split(key, 6)

    hidden_states = jax.random.normal(k0, (B, S, H), dtype=jnp.float32)
    input_tensor = jax.random.normal(k1, (B, S, H), dtype=jnp.float32)

    bound = 1.0 / math.sqrt(H)
    weight = jax.random.uniform(k2, (H, H), jnp.float32, -bound, bound)  # (out, in)
    bias = jax.random.uniform(k3, (H,), jnp.float32, -bound, bound)
    gamma = jnp.ones((H,), jnp.float32) + 0.01 * jax.random.normal(k4, (H,), jnp.float32)
    beta = 0.01 * jax.random.normal(k5, (H,), jnp.float32)

    out = paperlm_self_output(
        hidden_states, input_tensor, weight, bias, gamma, beta,
        eps=EPS, dropout_rate=0.1, deterministic=True,   # eval mode: dropout = identity
        block_rows=128)                                   # -> grid of 2 row tiles
    jax.block_until_ready(out)

    # Pure-JAX reference (dropout identity in eval mode).
    h = jnp.dot(hidden_states.reshape(-1, H), weight.T,
                precision=lax.Precision.HIGHEST) + bias
    xr = h + input_tensor.reshape(-1, H)
    mu = xr.mean(-1, keepdims=True)
    var = ((xr - mu) ** 2).mean(-1, keepdims=True)
    ref = ((xr - mu) / jnp.sqrt(var + EPS)) * gamma + beta
    ref = ref.reshape(B, S, H)

    assert out.shape == (B, S, H)
    assert jnp.allclose(out, ref, atol=1e-2, rtol=1e-2), \
        float(jnp.max(jnp.abs(out - ref)))
    print("KERNEL_OK")
</pallas_src>

<mosaic_0001>
module attributes {stable_mosaic.version = 11 : i64} {
  func.func @_self_output_kernel(%arg0: i32, %arg1: memref<1xi32, #tpu.memory_space<smem>>, %arg2: memref<128x256xf32, #tpu.memory_space<vmem>>, %arg3: memref<256x256xf32, #tpu.memory_space<vmem>>, %arg4: memref<1x256xf32, #tpu.memory_space<vmem>>, %arg5: memref<128x256xf32, #tpu.memory_space<vmem>>, %arg6: memref<1x256xf32, #tpu.memory_space<vmem>>, %arg7: memref<1x256xf32, #tpu.memory_space<vmem>>, %arg8: memref<128x256xf32, #tpu.memory_space<vmem>>) attributes {dimension_semantics = [#tpu.dimension_semantics<parallel>], iteration_bounds = array<i64: 2>, scalar_prefetch = 1 : i64, scratch_operands = 0 : i64, tpu.core_type = #tpu.core_type<tc>, window_params = [{transform_indices = @transform_0, window_bounds = array<i64: 128, 256>}, {pipeline_mode = #tpu.pipeline_mode<synchronous>, transform_indices = @transform_1, window_bounds = array<i64: 256, 256>}, {pipeline_mode = #tpu.pipeline_mode<synchronous>, transform_indices = @transform_2, window_bounds = array<i64: 1, 256>}, {transform_indices = @transform_3, window_bounds = array<i64: 128, 256>}, {pipeline_mode = #tpu.pipeline_mode<synchronous>, transform_indices = @transform_4, window_bounds = array<i64: 1, 256>}, {pipeline_mode = #tpu.pipeline_mode<synchronous>, transform_indices = @transform_5, window_bounds = array<i64: 1, 256>}, {transform_indices = @transform_6, window_bounds = array<i64: 128, 256>}]} {
    %c0 = arith.constant 0 : index
    %c0_0 = arith.constant 0 : index
    %0 = vector.load %arg2[%c0, %c0_0] : memref<128x256xf32, #tpu.memory_space<vmem>>, vector<128x256xf32>
    %c0_1 = arith.constant 0 : index
    %c0_2 = arith.constant 0 : index
    %1 = vector.load %arg3[%c0_1, %c0_2] : memref<256x256xf32, #tpu.memory_space<vmem>>, vector<256x256xf32>
    %cst = arith.constant dense<0.000000e+00> : vector<128x256xf32>
    %2 = tpu.matmul %0, %1, %cst {dimension_numbers = #tpu.dot_dimension_numbers<[1], [0], [0], [1], [0, 0, 1, 1], [], []>} : vector<128x256xf32>, vector<256x256xf32>, vector<128x256xf32> -> vector<128x256xf32>
    %c0_3 = arith.constant 0 : index
    %c0_4 = arith.constant 0 : index
    %3 = vector.load %arg4[%c0_3, %c0_4] : memref<1x256xf32, #tpu.memory_space<vmem>>, vector<1x256xf32>
    %4 = vector.broadcast %3 : vector<1x256xf32> to vector<128x256xf32>
    %5 = arith.addf %2, %4 : vector<128x256xf32>
    %c0_5 = arith.constant 0 : index
    %c0_6 = arith.constant 0 : index
    %6 = vector.load %arg5[%c0_5, %c0_6] : memref<128x256xf32, #tpu.memory_space<vmem>>, vector<128x256xf32>
    %7 = arith.addf %5, %6 : vector<128x256xf32>
    %cst_7 = arith.constant dense<0.000000e+00> : vector<128xf32>
    %8 = vector.multi_reduction <add>, %7, %cst_7 [1] : vector<128x256xf32> to vector<128xf32>
    %9 = vector.shape_cast %8 : vector<128xf32> to vector<128x1xf32>
    %cst_8 = arith.constant 2.560000e+02 : f32
    %10 = vector.broadcast %cst_8 : f32 to vector<128x1xf32>
    %11 = arith.divf %9, %10 : vector<128x1xf32>
    %12 = vector.broadcast %11 : vector<128x1xf32> to vector<128x256xf32>
    %13 = arith.subf %7, %12 : vector<128x256xf32>
    %14 = arith.mulf %13, %13 : vector<128x256xf32>
    %cst_9 = arith.constant dense<0.000000e+00> : vector<128xf32>
    %15 = vector.multi_reduction <add>, %14, %cst_9 [1] : vector<128x256xf32> to vector<128xf32>
    %16 = vector.shape_cast %15 : vector<128xf32> to vector<128x1xf32>
    %cst_10 = arith.constant 2.560000e+02 : f32
    %17 = vector.broadcast %cst_10 : f32 to vector<128x1xf32>
    %18 = arith.divf %16, %17 : vector<128x1xf32>
    %cst_11 = arith.constant 9.99999996E-13 : f32
    %19 = vector.broadcast %cst_11 : f32 to vector<128x1xf32>
    %20 = arith.addf %18, %19 : vector<128x1xf32>
    %21 = math.rsqrt %20 : vector<128x1xf32>
    %22 = vector.broadcast %21 : vector<128x1xf32> to vector<128x256xf32>
    %23 = arith.mulf %13, %22 : vector<128x256xf32>
    %c0_12 = arith.constant 0 : index
    %c0_13 = arith.constant 0 : index
    %24 = vector.load %arg6[%c0_12, %c0_13] : memref<1x256xf32, #tpu.memory_space<vmem>>, vector<1x256xf32>
    %25 = vector.broadcast %24 : vector<1x256xf32> to vector<128x256xf32>
    %26 = arith.mulf %23, %25 : vector<128x256xf32>
    %c0_14 = arith.constant 0 : index
    %c0_15 = arith.constant 0 : index
    %27 = vector.load %arg7[%c0_14, %c0_15] : memref<1x256xf32, #tpu.memory_space<vmem>>, vector<1x256xf32>
    %28 = vector.broadcast %27 : vector<1x256xf32> to vector<128x256xf32>
    %29 = arith.addf %26, %28 : vector<128x256xf32>
    %c0_16 = arith.constant 0 : index
    %c0_17 = arith.constant 0 : index
    %30 = vector.load %arg8[%c0_16, %c0_17] : memref<128x256xf32, #tpu.memory_space<vmem>>, vector<128x256xf32>
    tpu.vector_store %arg8[%c0_16, %c0_17], %29 {strides = array<i32>} : memref<128x256xf32, #tpu.memory_space<vmem>>, vector<128x256xf32>,
    return
  }
  func.func @transform_0(%arg0: i32, %arg1: memref<1xi32, #tpu.memory_space<smem>>) -> (i32, i32) {
    %c0_i32 = arith.constant 0 : i32
    %c0_i32_0 = arith.constant 0 : i32
    return %arg0, %c0_i32 : i32, i32
  }
  func.func @transform_1(%arg0: i32, %arg1: memref<1xi32, #tpu.memory_space<smem>>) -> (i32, i32) {
    %c0_i32 = arith.constant 0 : i32
    %c0_i32_0 = arith.constant 0 : i32
    %c0_i32_1 = arith.constant 0 : i32
    return %c0_i32, %c0_i32_0 : i32, i32
  }
  func.func @transform_2(%arg0: i32, %arg1: memref<1xi32, #tpu.memory_space<smem>>) -> (i32, i32) {
    %c0_i32 = arith.constant 0 : i32
    %c0_i32_0 = arith.constant 0 : i32
    %c0_i32_1 = arith.constant 0 : i32
    return %c0_i32, %c0_i32_0 : i32, i32
  }
  func.func @transform_3(%arg0: i32, %arg1: memref<1xi32, #tpu.memory_space<smem>>) -> (i32, i32) {
    %c0_i32 = arith.constant 0 : i32
    %c0_i32_0 = arith.constant 0 : i32
    return %arg0, %c0_i32 : i32, i32
  }
  func.func @transform_4(%arg0: i32, %arg1: memref<1xi32, #tpu.memory_space<smem>>) -> (i32, i32) {
    %c0_i32 = arith.constant 0 : i32
    %c0_i32_0 = arith.constant 0 : i32
    %c0_i32_1 = arith.constant 0 : i32
    return %c0_i32, %c0_i32_0 : i32, i32
  }
  func.func @transform_5(%arg0: i32, %arg1: memref<1xi32, #tpu.memory_space<smem>>) -> (i32, i32) {
    %c0_i32 = arith.constant 0 : i32
    %c0_i32_0 = arith.constant 0 : i32
    %c0_i32_1 = arith.constant 0 : i32
    return %c0_i32, %c0_i32_0 : i32, i32
  }
  func.func @transform_6(%arg0: i32, %arg1: memref<1xi32, #tpu.memory_space<smem>>) -> (i32, i32) {
    %c0_i32 = arith.constant 0 : i32
    %c0_i32_0 = arith.constant 0 : i32
    return %arg0, %c0_i32 : i32, i32
  }
}

</mosaic_0001>

<llo_original>
// kernel: tpu_custom_call.1
$region0: #{tpu_custom_call.1}
  #allocation0 [shape = 'u32[]', space=smem, size = 0x4, offset = 0x4, fixed_abs, tag = 'smem constant byte address 0x4 - core index']
  #allocation1 [shape = 'u32[144,128]{1,0:T(1,128)}', space=vmem, size = 0x12000, scoped, tag = 'internal scratch']
  #allocation2 [shape = 's32[1]{0}', space=sflag, size = 0x4, scoped, tag = 'scoped memory for tpu_custom_call.1']
  #allocation3 [shape = 's32[1]{0:T(128)S(6)}', space=smem, size = 0x200, scoped, tag = 'prefetched SMEM operand 0']
  %s0 = inlined_call_operand.<no memory space> [shape: s32[1], index: 0, kind: input, shape index: {}]
  %s1 = inlined_call_operand.hbm [shape: f32[256,256], index: 1, kind: input, shape index: {}]
  %s2 = inlined_call_operand.hbm [shape: f32[256,256], index: 2, kind: input, shape index: {}]
  %s3 = inlined_call_operand.vmem [shape: f32[1,256], index: 3, kind: input, shape index: {}]
  %s4 = inlined_call_operand.hbm [shape: f32[256,256], index: 4, kind: input, shape index: {}]
  %s5 = inlined_call_operand.vmem [shape: f32[1,256], index: 5, kind: input, shape index: {}]
  %s6 = inlined_call_operand.vmem [shape: f32[1,256], index: 6, kind: input, shape index: {}]
  %s7 = inlined_call_operand.hbm [shape: f32[256,256], index: 7, kind: output, shape index: {}]
  %s8 = sld [smem:[#allocation0]]
  $region69: #{tpu_custom_call.1} parent=0
    _
  %s10 = ssub.s32 1, %s8
  %s11 = scalar_select 0, %s10, %s8
  %12 = sst [smem:[#allocation3]] %s0
  $region1: #{tpu_custom_call.1} parent=0
    #allocation4 [shape = 'u8[262144]{0}', space=vmem, size = 0x40000, scoped, tag = 'input window, operand 1']
    #allocation5 [shape = 's32[2]{0}', space=sflag, size = 0x8, scoped, tag = 'scoped memory for tpu_custom_call.1']
    #allocation6 [shape = 's32[2]{0}', space=sflag, size = 0x8, scoped, tag = 'scoped memory for tpu_custom_call.1']
    #allocation7 [shape = 'u8[262144]{0}', space=vmem, size = 0x40000, scoped, tag = 'input window, operand 2, single buffered']
    #allocation8 [shape = 's32[1]{0}', space=sflag, size = 0x4, scoped, tag = 'scoped memory for tpu_custom_call.1']
    #allocation9 [shape = 'u8[262144]{0}', space=vmem, size = 0x40000, scoped, tag = 'input window, operand 4']
    #allocation10 [shape = 'u8[262144]{0}', space=vmem, size = 0x40000, scoped, tag = 'output window, operand 0']
    %13 = vsyncpa [#allocation5], 0
    %s14 = scalar_lea.sflag [#allocation5], 1
    %15 = vsyncpa %s14, 0
    %16 = vsyncpa [#allocation8], 0
    %17 = vsyncpa [#allocation6], 0
    %s18 = scalar_lea.sflag [#allocation6], 1
    %19 = vsyncpa %s18, 0
    loop: start=0, step=1, limit=4
    $region2: #{tpu_custom_call.1} parent=1 // loop_pre_header
      _
    $region3: #{tpu_custom_call.1} parent=1 // loop_header
      %s21 = sphi 0, %s25
      %p22 = scmp.ge.s32.totalorder %s21, 4
      %s31 = sphi 0, %s33
      %s34 = sphi 0, %s31
      %s35 = sphi 0, %s34
      %s51 = sphi 0, %s35
      %s55 = sphi 0, %s55
      %s57 = sphi 0, %s55
      %s58 = sphi 0, %s57
      %s72 = sphi 0, %s58
      %s76 = sphi 0, %s76
      %s78 = sphi 0, %s76
      %s79 = sphi 0, %s78
      %s93 = sphi 0, %s79
      %s99 = sphi 0, %s101
      %s102 = sphi 0, %s99
      %s103 = sphi 0, %s102
      %s119 = sphi 0, %s103
      %s123 = sphi 0, %s123
      %s125 = sphi 0, %s123
      %s126 = sphi 0, %s125
      %s140 = sphi 0, %s126
      %s144 = sphi 0, %s144
      %s146 = sphi 0, %s144
      %s147 = sphi 0, %s146
      %s161 = sphi 0, %s147
      %s167 = sphi 0, %s169
      %s170 = sphi 0, %s167
      %s171 = sphi 0, %s170
      %s187 = sphi 0, %s171
    $region4: #{tpu_custom_call.1} parent=1 // loop_header_branch
      %24 = sbr.rel (%p22) target = $region8
    $region5: #{tpu_custom_call.1} parent=1 // loop_body
      %s26 = ssub.s32 %s21, 1
      %s27 = ssub.s32 %s21, 2
      %s28 = sadd.s32 %s21, 1
      %s29 = ssub.s32 %s21, %s28
      %p30 = scmp.eq.s32.totalorder %s29, 0
      %s32 = sadd.s32 %s31, 1
      %s33 = scalar_select %p30, %s31, %s32
      %p36 = pneg %p30
      %p37 = scmp.eq.s32.totalorder %s21, 1
      %p38 = por %p36, %p37
      %p39 = scmp.ne.s32.totalorder %s31, %s34
      %p40 = scmp.eq.s32.totalorder %s21, 0
      %p41 = por %p39, %p40
      %p42 = scmp.ne.s32.totalorder %s31, %s34
      %p43 = scmp.eq.s32.totalorder %s26, 1
      %p44 = por %p42, %p43
      %p45 = scmp.ne.s32.totalorder %s34, %s35
      %p46 = scmp.eq.s32.totalorder %s26, 0
      %p47 = por %p45, %p46
      %p48 = scmp.ne.s32.totalorder %s34, %s35
      %p49 = scmp.eq.s32.totalorder %s27, 1
      %p50 = por %p48, %p49
      %p52 = scmp.ne.s32.totalorder %s35, %s51
      %p53 = scmp.eq.s32.totalorder %s27, 0
      %p54 = por %p52, %p53
      %s56 = sadd.s32 %s55, 1
      %p59 = scmp.eq.s32.totalorder %s21, 1
      %p60 = scmp.ne.s32.totalorder %s55, %s57
      %p61 = scmp.eq.s32.totalorder %s21, 0
      %p62 = por %p60, %p61
      %p63 = scmp.ne.s32.totalorder %s55, %s57
      %p64 = scmp.eq.s32.totalorder %s26, 1
      %p65 = por %p63, %p64
      %p66 = scmp.ne.s32.totalorder %s57, %s58
      %p67 = scmp.eq.s32.totalorder %s26, 0
      %p68 = por %p66, %p67
      %p69 = scmp.ne.s32.totalorder %s57, %s58
      %p70 = scmp.eq.s32.totalorder %s27, 1
      %p71 = por %p69, %p70
      %p73 = scmp.ne.s32.totalorder %s58, %s72
      %p74 = scmp.eq.s32.totalorder %s27, 0
      %p75 = por %p73, %p74
      %s77 = sadd.s32 %s76, 1
      %p80 = scmp.eq.s32.totalorder %s21, 1
      %p81 = scmp.ne.s32.totalorder %s76, %s78
      %p82 = scmp.eq.s32.totalorder %s21, 0
      %p83 = por %p81, %p82
      %p84 = scmp.ne.s32.totalorder %s76, %s78
      %p85 = scmp.eq.s32.totalorder %s26, 1
      %p86 = por %p84, %p85
      %p87 = scmp.ne.s32.totalorder %s78, %s79
      %p88 = scmp.eq.s32.totalorder %s26, 0
      %p89 = por %p87, %p88
      %p90 = scmp.ne.s32.totalorder %s78, %s79
      %p91 = scmp.eq.s32.totalorder %s27, 1
      %p92 = por %p90, %p91
      %p94 = scmp.ne.s32.totalorder %s79, %s93
      %p95 = scmp.eq.s32.totalorder %s27, 0
      %p96 = por %p94, %p95
      %s97 = ssub.s32 %s21, %s28
      %p98 = scmp.eq.s32.totalorder %s97, 0
      %s100 = sadd.s32 %s99, 1
      %s101 = scalar_select %p98, %s99, %s100
      %p104 = pneg %p98
      %p105 = scmp.eq.s32.totalorder %s21, 1
      %p106 = por %p104, %p105
      %p107 = scmp.ne.s32.totalorder %s99, %s102
      %p108 = scmp.eq.s32.totalorder %s21, 0
      %p109 = por %p107, %p108
      %p110 = scmp.ne.s32.totalorder %s99, %s102
      %p111 = scmp.eq.s32.totalorder %s26, 1
      %p112 = por %p110, %p111
      %p113 = scmp.ne.s32.totalorder %s102, %s103
      %p114 = scmp.eq.s32.totalorder %s26, 0
      %p115 = por %p113, %p114
      %p116 = scmp.ne.s32.totalorder %s102, %s103
      %p117 = scmp.eq.s32.totalorder %s27, 1
      %p118 = por %p116, %p117
      %p120 = scmp.ne.s32.totalorder %s103, %s119
      %p121 = scmp.eq.s32.totalorder %s27, 0
      %p122 = por %p120, %p121
      %s124 = sadd.s32 %s123, 1
      %p127 = scmp.eq.s32.totalorder %s21, 1
      %p128 = scmp.ne.s32.totalorder %s123, %s125
      %p129 = scmp.eq.s32.totalorder %s21, 0
      %p130 = por %p128, %p129
      %p131 = scmp.ne.s32.totalorder %s123, %s125
      %p132 = scmp.eq.s32.totalorder %s26, 1
      %p133 = por %p131, %p132
      %p134 = scmp.ne.s32.totalorder %s125, %s126
      %p135 = scmp.eq.s32.totalorder %s26, 0
      %p136 = por %p134, %p135
      %p137 = scmp.ne.s32.totalorder %s125, %s126
      %p138 = scmp.eq.s32.totalorder %s27, 1
      %p139 = por %p137, %p138
      %p141 = scmp.ne.s32.totalorder %s126, %s140
      %p142 = scmp.eq.s32.totalorder %s27, 0
      %p143 = por %p141, %p142
      %s145 = sadd.s32 %s144, 1
      %p148 = scmp.eq.s32.totalorder %s21, 1
      %p149 = scmp.ne.s32.totalorder %s144, %s146
      %p150 = scmp.eq.s32.totalorder %s21, 0
      %p151 = por %p149, %p150
      %p152 = scmp.ne.s32.totalorder %s144, %s146
      %p153 = scmp.eq.s32.totalorder %s26, 1
      %p154 = por %p152, %p153
      %p155 = scmp.ne.s32.totalorder %s146, %s147
      %p156 = scmp.eq.s32.totalorder %s26, 0
      %p157 = por %p155, %p156
      %p158 = scmp.ne.s32.totalorder %s146, %s147
      %p159 = scmp.eq.s32.totalorder %s27, 1
      %p160 = por %p158, %p159
      %p162 = scmp.ne.s32.totalorder %s147, %s161
      %p163 = scmp.eq.s32.totalorder %s27, 0
      %p164 = por %p162, %p163
      %s165 = ssub.s32 %s21, %s28
      %p166 = scmp.eq.s32.totalorder %s165, 0
      %s168 = sadd.s32 %s167, 1
      %s169 = scalar_select %p166, %s167, %s168
      %p172 = pneg %p166
      %p173 = scmp.eq.s32.totalorder %s21, 1
      %p174 = por %p172, %p173
      %p175 = scmp.ne.s32.totalorder %s167, %s170
      %p176 = scmp.eq.s32.totalorder %s21, 0
      %p177 = por %p175, %p176
      %p178 = scmp.ne.s32.totalorder %s167, %s170
      %p179 = scmp.eq.s32.totalorder %s26, 1
      %p180 = por %p178, %p179
      %p181 = scmp.ne.s32.totalorder %s170, %s171
      %p182 = scmp.eq.s32.totalorder %s26, 0
      %p183 = por %p181, %p182
      %p184 = scmp.ne.s32.totalorder %s170, %s171
      %p185 = scmp.eq.s32.totalorder %s27, 1
      %p186 = por %p184, %p185
      %p188 = scmp.ne.s32.totalorder %s171, %s187
      %p189 = scmp.eq.s32.totalorder %s27, 0
      %p190 = por %p188, %p189
      %p191 = scmp.le.s32.totalorder 1, %s21
      %p192 = scmp.lt.s32.totalorder %s21, 3
      %p193 = pnand %p191, %p192
      %p194 = pneg %p193
      // Predicated region
      $region9: #{tpu_custom_call.1} parent=5 // pred_check
        _
      $region10: #{tpu_custom_call.1} parent=5 // pred_check_branch
        %196 = sbr.rel (%p193) target = $region12
      $region11: #{tpu_custom_call.1} parent=5 // pred_region
        %s197 = ssub.s32 %s21, 1
        // Predicated region
        $region13: #{tpu_custom_call.1} parent=11 // pred_check
          %p198 = pneg %p68
        $region14: #{tpu_custom_call.1} parent=11 // pred_check_branch
          %200 = sbr.rel (%p198) target = $region16
        $region15: #{tpu_custom_call.1} parent=11 // pred_region
          %s202 = ssub.s32 8192, 8192
          %203 = vsyncadd [#allocation8], %s202
          %s204 = sshll.u32 [#allocation7], 4
          %s205 = int_to_ptr.vmem [resolvable:$true] %s204
          %210 = dma.hbm_to_vmem [thread:$0]  %s2, 8192, %s205, [#allocation8], 256, 256, 16
        $region16: #{tpu_custom_call.1} parent=11 // pred_fallthru
          _
        // Predicated region
        $region17: #{tpu_custom_call.1} parent=11 // pred_check
          %p211 = pneg %p89
        $region18: #{tpu_custom_call.1} parent=11 // pred_check_branch
          %213 = sbr.rel (%p211) target = $region20
        $region19: #{tpu_custom_call.1} parent=11 // pred_region
          _
        $region20: #{tpu_custom_call.1} parent=11 // pred_fallthru
          _
        // Predicated region
        $region21: #{tpu_custom_call.1} parent=11 // pred_check
          %p214 = pneg %p136
        $region22: #{tpu_custom_call.1} parent=11 // pred_check_branch
          %216 = sbr.rel (%p214) target = $region24
        $region23: #{tpu_custom_call.1} parent=11 // pred_region
          _
        $region24: #{tpu_custom_call.1} parent=11 // pred_fallthru
          _
        // Predicated region
        $region25: #{tpu_custom_call.1} parent=11 // pred_check
          %p217 = pneg %p157
        $region26: #{tpu_custom_call.1} parent=11 // pred_check_branch
          %219 = sbr.rel (%p217) target = $region28
        $region27: #{tpu_custom_call.1} parent=11 // pred_region
          _
        $region28: #{tpu_custom_call.1} parent=11 // pred_fallthru
          _
      $region12: #{tpu_custom_call.1} parent=5 // pred_fallthru
        _
      %p220 = scmp.lt.s32.totalorder %s21, 2
      // Predicated region
      $region29: #{tpu_custom_call.1} parent=5 // pred_check
        %p221 = pneg %p220
      $region30: #{tpu_custom_call.1} parent=5 // pred_check_branch
        %223 = sbr.rel (%p221) target = $region32
      $region31: #{tpu_custom_call.1} parent=5 // pred_region
        // Predicated region
        $region33: #{tpu_custom_call.1} parent=31 // pred_check
          %p224 = pneg %p41
        $region34: #{tpu_custom_call.1} parent=31 // pred_check_branch
          %226 = sbr.rel (%p224) target = $region36
        $region35: #{tpu_custom_call.1} parent=31 // pred_region
          %s227 = sand.u32 %s21, 1
          %s228 = scalar_lea.sflag [#allocation5], %s227
          %s229 = sand.u32 %s31, 1
          %s230 = smul.addr %s229, 256
          %s231 = scalar_lea.vmem [#allocation4], %s230
          %s232 = smul.u32 16, %s21
          %s234 = ssub.s32 4096, 4096
          %235 = vsyncadd %s228, %s234
          %s236 = smul.addr %s232, 2
          %s237 = smul.addr %s236, 128
          %s238 = scalar_lea.hbm %s1, %s237
          %s239 = sshll.u32 %s231, 4
          %s240 = int_to_ptr.vmem [resolvable:$true] %s239
          %245 = dma.hbm_to_vmem [thread:$0]  %s238, 4096, %s240, %s228, 256, 256, 16
        $region36: #{tpu_custom_call.1} parent=31 // pred_fallthru
          _
        // Predicated region
        $region37: #{tpu_custom_call.1} parent=31 // pred_check
          %p246 = pneg %p109
        $region38: #{tpu_custom_call.1} parent=31 // pred_check_branch
          %248 = sbr.rel (%p246) target = $region40
        $region39: #{tpu_custom_call.1} parent=31 // pred_region
          %s249 = sand.u32 %s21, 1
          %s250 = scalar_lea.sflag [#allocation5], %s249
          %s251 = sand.u32 %s99, 1
          %s252 = smul.addr %s251, 256
          %s253 = scalar_lea.vmem [#allocation9], %s252
          %s254 = smul.u32 16, %s21
          %s256 = ssub.s32 4096, 4096
          %257 = vsyncadd %s250, %s256
          %s258 = smul.addr %s254, 2
          %s259 = smul.addr %s258, 128
          %s260 = scalar_lea.hbm %s4, %s259
          %s261 = sshll.u32 %s253, 4
          %s262 = int_to_ptr.vmem [resolvable:$true] %s261
          %267 = dma.hbm_to_vmem [thread:$0]  %s260, 4096, %s262, %s250, 256, 256, 16
        $region40: #{tpu_custom_call.1} parent=31 // pred_fallthru
          _
      $region32: #{tpu_custom_call.1} parent=5 // pred_fallthru
        _
      %p268 = scmp.le.s32.totalorder 1, %s21
      %p269 = scmp.lt.s32.totalorder %s21, 3
      %p270 = pnand %p268, %p269
      %p271 = pneg %p270
      // Predicated region
      $region41: #{tpu_custom_call.1} parent=5 // pred_check
        _
      $region42: #{tpu_custom_call.1} parent=5 // pred_check_branch
        %273 = sbr.rel (%p270) target = $region44
      $region43: #{tpu_custom_call.1} parent=5 // pred_region
        %s274 = ssub.s32 %s21, 1
        %s275 = sand.u32 %s26, 1
        %s276 = scalar_lea.sflag [#allocation5], %s275
        %s277 = sand.u32 %s34, 1
        %s278 = smul.addr %s277, 256
        %s279 = scalar_lea.vmem [#allocation4], %s278
        // Predicated region
        $region45: #{tpu_custom_call.1} parent=43 // pred_check
          %p280 = pneg %p47
        $region46: #{tpu_custom_call.1} parent=43 // pred_check_branch
          %282 = sbr.rel (%p280) target = $region48
        $region47: #{tpu_custom_call.1} parent=43 // pred_region
          %283 = dma.done %s276, 4096
        $region48: #{tpu_custom_call.1} parent=43 // pred_fallthru
          _
        // Predicated region
        $region49: #{tpu_custom_call.1} parent=43 // pred_check
          %p284 = pneg %p68
        $region50: #{tpu_custom_call.1} parent=43 // pred_check_branch
          %286 = sbr.rel (%p284) target = $region52
        $region51: #{tpu_custom_call.1} parent=43 // pred_region
          %287 = dma.done [#allocation8], 8192
        $region52: #{tpu_custom_call.1} parent=43 // pred_fallthru
          _
        %s288 = sand.u32 %s26, 1
        %s289 = scalar_lea.sflag [#allocation5], %s288
        %s290 = sand.u32 %s102, 1
        %s291 = smul.addr %s290, 256
        %s292 = scalar_lea.vmem [#allocation9], %s291
        // Predicated region
        $region53: #{tpu_custom_call.1} parent=43 // pred_check
          %p293 = pneg %p115
        $region54: #{tpu_custom_call.1} parent=43 // pred_check_branch
          %295 = sbr.rel (%p293) target = $region56
        $region55: #{tpu_custom_call.1} parent=43 // pred_region
          %296 = dma.done %s289, 4096
        $region56: #{tpu_custom_call.1} parent=43 // pred_fallthru
          _
        %s297 = sand.u32 %s26, 1
        %s298 = scalar_lea.sflag [#allocation5], %s297
        %s299 = sand.u32 %s34, 1
        %s300 = smul.addr %s299, 256
        %s301 = scalar_lea.vmem [#allocation4], %s300
        %p302 = pneg %p47
        %p303 = pneg %p44
        %p304 = pneg %p68
        %p305 = pneg %p65
        %p306 = pneg %p89
        %p307 = pneg %p86
        %s308 = sand.u32 %s26, 1
        %s309 = scalar_lea.sflag [#allocation5], %s308
        %s310 = sand.u32 %s102, 1
        %s311 = smul.addr %s310, 256
        %s312 = scalar_lea.vmem [#allocation9], %s311
        %p313 = pneg %p115
        %p314 = pneg %p112
        %p315 = pneg %p136
        %p316 = pneg %p133
        %p317 = pneg %p157
        %p318 = pneg %p154
        %p319 = pneg %p183
        %p320 = pneg %p180
        %s321 = sand.u32 %s170, 1
        %s322 = scalar_lea.sflag [#allocation6], %s321
        %s323 = sand.u32 %s170, 1
        %s324 = smul.addr %s323, 256
        %s325 = scalar_lea.vmem [#allocation10], %s324
        %s326 = smul.u32 16, %s26
        %s327 = smul.u32 16, %s26
        %s328 = smul.u32 16, %s26
        %v329 = vld [vmem:[%s279] sm:$0xff]
        %v330 = vld [vmem:[%s279 + $0x8] sm:$0xff]
        %v331 = vld [vmem:[%s279 + $0x10] sm:$0xff]
        %v332 = vld [vmem:[%s279 + $0x18] sm:$0xff]
        %v333 = vld [vmem:[%s279 + $0x20] sm:$0xff]
        %v334 = vld [vmem:[%s279 + $0x28] sm:$0xff]
        %v335 = vld [vmem:[%s279 + $0x30] sm:$0xff]
        %v336 = vld [vmem:[%s279 + $0x38] sm:$0xff]
        %v337 = vld [vmem:[%s279 + $0x40] sm:$0xff]
        %v338 = vld [vmem:[%s279 + $0x48] sm:$0xff]
        %v339 = vld [vmem:[%s279 + $0x50] sm:$0xff]
        %v340 = vld [vmem:[%s279 + $0x58] sm:$0xff]
        %v341 = vld [vmem:[%s279 + $0x60] sm:$0xff]
        %v342 = vld [vmem:[%s279 + $0x68] sm:$0xff]
        %v343 = vld [vmem:[%s279 + $0x70] sm:$0xff]
        %v344 = vld [vmem:[%s279 + $0x78] sm:$0xff]
        %v345 = vld [vmem:[%s279 + $0x80] sm:$0xff]
        %v346 = vld [vmem:[%s279 + $0x88] sm:$0xff]
        %v347 = vld [vmem:[%s279 + $0x90] sm:$0xff]
        %v348 = vld [vmem:[%s279 + $0x98] sm:$0xff]
        %v349 = vld [vmem:[%s279 + $0xa0] sm:$0xff]
        %v350 = vld [vmem:[%s279 + $0xa8] sm:$0xff]
        %v351 = vld [vmem:[%s279 + $0xb0] sm:$0xff]
        %v352 = vld [vmem:[%s279 + $0xb8] sm:$0xff]
        %v353 = vld [vmem:[%s279 + $0xc0] sm:$0xff]
        %v354 = vld [vmem:[%s279 + $0xc8] sm:$0xff]
        %v355 = vld [vmem:[%s279 + $0xd0] sm:$0xff]
        %v356 = vld [vmem:[%s279 + $0xd8] sm:$0xff]
        %v357 = vld [vmem:[%s279 + $0xe0] sm:$0xff]
        %v358 = vld [vmem:[%s279 + $0xe8] sm:$0xff]
        %v359 = vld [vmem:[%s279 + $0xf0] sm:$0xff]
        %v360 = vld [vmem:[%s279 + $0xf8] sm:$0xff]
        %v361 = vld [vmem:[#allocation7] sm:$0xff]
        %v362 = vld [vmem:[#allocation7 + $0x8] sm:$0xff]
        %v363 = vld [vmem:[#allocation7 + $0x10] sm:$0xff]
        %v364 = vld [vmem:[#allocation7 + $0x18] sm:$0xff]
        %v365 = vld [vmem:[#allocation7 + $0x20] sm:$0xff]
        %v366 = vld [vmem:[#allocation7 + $0x28] sm:$0xff]
        %v367 = vld [vmem:[#allocation7 + $0x30] sm:$0xff]
        %v368 = vld [vmem:[#allocation7 + $0x38] sm:$0xff]
        %v369 = vld [vmem:[#allocation7 + $0x40] sm:$0xff]
        %v370 = vld [vmem:[#allocation7 + $0x48] sm:$0xff]
        %v371 = vld [vmem:[#allocation7 + $0x50] sm:$0xff]
        %v372 = vld [vmem:[#allocation7 + $0x58] sm:$0xff]
        %v373 = vld [vmem:[#allocation7 + $0x60] sm:$0xff]
        %v374 = vld [vmem:[#allocation7 + $0x68] sm:$0xff]
        %v375 = vld [vmem:[#allocation7 + $0x70] sm:$0xff]
        %v376 = vld [vmem:[#allocation7 + $0x78] sm:$0xff]
        %v377 = vld [vmem:[#allocation7 + $0x80] sm:$0xff]
        %v378 = vld [vmem:[#allocation7 + $0x88] sm:$0xff]
        %v379 = vld [vmem:[#allocation7 + $0x90] sm:$0xff]
        %v380 = vld [vmem:[#allocation7 + $0x98] sm:$0xff]
        %v381 = vld [vmem:[#allocation7 + $0xa0] sm:$0xff]
        %v382 = vld [vmem:[#allocation7 + $0xa8] sm:$0xff]
        %v383 = vld [vmem:[#allocation7 + $0xb0] sm:$0xff]
        %v384 = vld [vmem:[#allocation7 + $0xb8] sm:$0xff]
        %v385 = vld [vmem:[#allocation7 + $0xc0] sm:$0xff]
        %v386 = vld [vmem:[#allocation7 + $0xc8] sm:$0xff]
        %v387 = vld [vmem:[#allocation7 + $0xd0] sm:$0xff]
        %v388 = vld [vmem:[#allocation7 + $0xd8] sm:$0xff]
        %v389 = vld [vmem:[#allocation7 + $0xe0] sm:$0xff]
        %v390 = vld [vmem:[#allocation7 + $0xe8] sm:$0xff]
        %v391 = vld [vmem:[#allocation7 + $0xf0] sm:$0xff]
        %v392 = vld [vmem:[#allocation7 + $0xf8] sm:$0xff]
        %v393 = vld [vmem:[#allocation7 + $0x100] sm:$0xff]
        %v394 = vld [vmem:[#allocation7 + $0x108] sm:$0xff]
        %v395 = vld [vmem:[#allocation7 + $0x110] sm:$0xff]
        %v396 = vld [vmem:[#allocation7 + $0x118] sm:$0xff]
        %v397 = vld [vmem:[#allocation7 + $0x120] sm:$0xff]
        %v398 = vld [vmem:[#allocation7 + $0x128] sm:$0xff]
        %v399 = vld [vmem:[#allocation7 + $0x130] sm:$0xff]
        %v400 = vld [vmem:[#allocation7 + $0x138] sm:$0xff]
        %v401 = vld [vmem:[#allocation7 + $0x140] sm:$0xff]
        %v402 = vld [vmem:[#allocation7 + $0x148] sm:$0xff]
        %v403 = vld [vmem:[#allocation7 + $0x150] sm:$0xff]
        %v404 = vld [vmem:[#allocation7 + $0x158] sm:$0xff]
        %v405 = vld [vmem:[#allocation7 + $0x160] sm:$0xff]
        %v406 = vld [vmem:[#allocation7 + $0x168] sm:$0xff]
        %v407 = vld [vmem:[#allocation7 + $0x170] sm:$0xff]
        %v408 = vld [vmem:[#allocation7 + $0x178] sm:$0xff]
        %v409 = vld [vmem:[#allocation7 + $0x180] sm:$0xff]
        %v410 = vld [vmem:[#allocation7 + $0x188] sm:$0xff]
        %v411 = vld [vmem:[#allocation7 + $0x190] sm:$0xff]
        %v412 = vld [vmem:[#allocation7 + $0x198] sm:$0xff]
        %v413 = vld [vmem:[#allocation7 + $0x1a0] sm:$0xff]
        %v414 = vld [vmem:[#allocation7 + $0x1a8] sm:$0xff]
        %v415 = vld [vmem:[#allocation7 + $0x1b0] sm:$0xff]
        %v416 = vld [vmem:[#allocation7 + $0x1b8] sm:$0xff]
        %v417 = vld [vmem:[#allocation7 + $0x1c0] sm:$0xff]
        %v418 = vld [vmem:[#allocation7 + $0x1c8] sm:$0xff]
        %v419 = vld [vmem:[#allocation7 + $0x1d0] sm:$0xff]
        %v420 = vld [vmem:[#allocation7 + $0x1d8] sm:$0xff]
        %v421 = vld [vmem:[#allocation7 + $0x1e0] sm:$0xff]
        %v422 = vld [vmem:[#allocation7 + $0x1e8] sm:$0xff]
        %v423 = vld [vmem:[#allocation7 + $0x1f0] sm:$0xff]
        %v424 = vld [vmem:[#allocation7 + $0x1f8] sm:$0xff]
        %v425 = vld [vmem:[%s3] sm:$0x3]
        %v427 = vlaneseq
        %v428 = vshrl.u32 %v427, 7
        %v429 = vsub.s32 0, %v428
        %v430 = vrot.slane %v425, %v429
        %v431 = vlaneseq
        %v432 = vshrl.u32 %v431, 7
        %v433 = vsub.s32 1, %v432
        %v434 = vrot.slane %v425, %v433
        %437 = vmatprep.subr.mxu0 %v362
        %438 = vmatpush1.msra.mxu0 %v361
        %439 = vmatprep.subr.mxu0 %v364
        %440 = vmatpush1.msra.mxu0 %v363
        %441 = vmatprep.subr.mxu0 %v366
        %442 = vmatpush1.msra.mxu0 %v365
        %443 = vmatprep.subr.mxu0 %v368
        %444 = vmatpush1.msra.mxu0 %v367
        %445 = vmatprep.subr.mxu0 %v370
        %446 = vmatpush1.msra.mxu0 %v369
        %447 = vmatprep.subr.mxu0 %v372
        %448 = vmatpush1.msra.mxu0 %v371
        %449 = vmatprep.subr.mxu0 %v374
        %450 = vmatpush1.msra.mxu0 %v373
        %451 = vmatprep.subr.mxu0 %v376
        %452 = vmatpush1.msra.mxu0 %v375
        %453 = vmatprep.subr.mxu0 %v378
        %454 = vmatpush1.msra.mxu0 %v377
        %455 = vmatprep.subr.mxu0 %v380
        %456 = vmatpush1.msra.mxu0 %v379
        %457 = vmatprep.subr.mxu0 %v382
        %458 = vmatpush1.msra.mxu0 %v381
        %459 = vmatprep.subr.mxu0 %v384
        %460 = vmatpush1.msra.mxu0 %v383
        %461 = vmatprep.subr.mxu0 %v386
        %462 = vmatpush1.msra.mxu0 %v385
        %463 = vmatprep.subr.mxu0 %v388
        %464 = vmatpush1.msra.mxu0 %v387
        %465 = vmatprep.subr.mxu0 %v390
        %466 = vmatpush1.msra.mxu0 %v389
        %467 = vmatprep.subr.mxu0 %v392
        %468 = vmatpush1.msra.mxu0 %v391
        %469 = vmatprep.subr.mxu0 %v394
        %470 = vmatpush1.msra.mxu0 %v393
        %471 = vmatprep.subr.mxu0 %v396
        %472 = vmatpush1.msra.mxu0 %v395
        %473 = vmatprep.subr.mxu0 %v398
        %474 = vmatpush1.msra.mxu0 %v397
        %475 = vmatprep.subr.mxu0 %v400
        %476 = vmatpush1.msra.mxu0 %v399
        %477 = vmatprep.subr.mxu0 %v402
        %478 = vmatpush1.msra.mxu0 %v401
        %479 = vmatprep.subr.mxu0 %v404
        %480 = vmatpush1.msra.mxu0 %v403
        %481 = vmatprep.subr.mxu0 %v406
        %482 = vmatpush1.msra.mxu0 %v405
        %483 = vmatprep.subr.mxu0 %v408
        %484 = vmatpush1.msra.mxu0 %v407
        %485 = vmatprep.subr.mxu0 %v410
        %486 = vmatpush1.msra.mxu0 %v409
        %487 = vmatprep.subr.mxu0 %v412
        %488 = vmatpush1.msra.mxu0 %v411
        %489 = vmatprep.subr.mxu0 %v414
        %490 = vmatpush1.msra.mxu0 %v413
        %491 = vmatprep.subr.mxu0 %v416
        %492 = vmatpush1.msra.mxu0 %v415
        %493 = vmatprep.subr.mxu0 %v418
        %494 = vmatpush1.msra.mxu0 %v417
        %495 = vmatprep.subr.mxu0 %v420
        %496 = vmatpush1.msra.mxu0 %v419
        %497 = vmatprep.subr.mxu0 %v422
        %498 = vmatpush1.msra.mxu0 %v421
        %499 = vmatprep.subr.mxu0 %v424
        %500 = vmatpush1.msra.mxu0 %v423
        %501 = vmatprep.mubr.f32.mxu0 %v330
        %502 = vmatmul.mubr.f32.gmra.mrb[0].mxu0 %v329
        %v503 = vpop.f32.mrb[0].mxu0
        %v504 = vadd.f32 %v430, %v503
        %v505 = vpop.f32.mrb[0].mxu0
        %v506 = vadd.f32 %v434, %v505
        %507 = vmatprep.mubr.f32.mxu0 %v332
        %508 = vmatmul.mubr.f32.gmra.mrb[0].mxu0 %v331
        %v509 = vpop.f32.mrb[0].mxu0
        %v510 = vadd.f32 %v430, %v509
        %v511 = vpop.f32.mrb[0].mxu0
        %v512 = vadd.f32 %v434, %v511
        %513 = vmatprep.mubr.f32.mxu0 %v334
        %514 = vmatmul.mubr.f32.gmra.mrb[0].mxu0 %v333
        %v515 = vpop.f32.mrb[0].mxu0
        %v516 = vadd.f32 %v430, %v515
        %v517 = vpop.f32.mrb[0].mxu0
        %v518 = vadd.f32 %v434, %v517
        %519 = vmatprep.mubr.f32.mxu0 %v336
        %520 = vmatmul.mubr.f32.gmra.mrb[0].mxu0 %v335
        %v521 = vpop.f32.mrb[0].mxu0
        %v522 = vadd.f32 %v430, %v521
        %v523 = vpop.f32.mrb[0].mxu0
        %v524 = vadd.f32 %v434, %v523
        %525 = vmatprep.mubr.f32.mxu0 %v338
        %526 = vmatmul.mubr.f32.gmra.mrb[0].mxu0 %v337
        %v527 = vpop.f32.mrb[0].mxu0
        %v528 = vadd.f32 %v430, %v527
        %v529 = vpop.f32.mrb[0].mxu0
        %v530 = vadd.f32 %v434, %v529
        %531 = vmatprep.mubr.f32.mxu0 %v340
        %532 = vmatmul.mubr.f32.gmra.mrb[0].mxu0 %v339
        %v533 = vpop.f32.mrb[0].mxu0
        %v534 = vadd.f32 %v430, %v533
        %v535 = vpop.f32.mrb[0].mxu0
        %v536 = vadd.f32 %v434, %v535
        %537 = vmatprep.mubr.f32.mxu0 %v342
        %538 = vmatmul.mubr.f32.gmra.mrb[0].mxu0 %v341
        %v539 = vpop.f32.mrb[0].mxu0
        %v540 = vadd.f32 %v430, %v539
        %v541 = vpop.f32.mrb[0].mxu0
        %v542 = vadd.f32 %v434, %v541
        %543 = vmatprep.mubr.f32.mxu0 %v344
        %544 = vmatmul.mubr.f32.gmra.mrb[0].mxu0 %v343
        %v545 = vpop.f32.mrb[0].mxu0
        %v546 = vadd.f32 %v430, %v545
        %v547 = vpop.f32.mrb[0].mxu0
        %v548 = vadd.f32 %v434, %v547
        %549 = vmatprep.mubr.f32.mxu0 %v346
        %550 = vmatmul.mubr.f32.gmra.mrb[0].mxu0 %v345
        %v551 = vpop.f32.mrb[0].mxu0
        %v552 = vadd.f32 %v430, %v551
        %v553 = vpop.f32.mrb[0].mxu0
        %v554 = vadd.f32 %v434, %v553
        %555 = vmatprep.mubr.f32.mxu0 %v348
        %556 = vmatmul.mubr.f32.gmra.mrb[0].mxu0 %v347
        %v557 = vpop.f32.mrb[0].mxu0
        %v558 = vadd.f32 %v430, %v557
        %v559 = vpop.f32.mrb[0].mxu0
        %v560 = vadd.f32 %v434, %v559
        %561 = vmatprep.mubr.f32.mxu0 %v350
        %562 = vmatmul.mubr.f32.gmra.mrb[0].mxu0 %v349
        %v563 = vpop.f32.mrb[0].mxu0
        %v564 = vadd.f32 %v430, %v563
        %v565 = vpop.f32.mrb[0].mxu0
        %v566 = vadd.f32 %v434, %v565
        %567 = vmatprep.mubr.f32.mxu0 %v352
        %568 = vmatmul.mubr.f32.gmra.mrb[0].mxu0 %v351
        %v569 = vpop.f32.mrb[0].mxu0
        %v570 = vadd.f32 %v430, %v569
        %v571 = vpop.f32.mrb[0].mxu0
        %v572 = vadd.f32 %v434, %v571
        %573 = vmatprep.mubr.f32.mxu0 %v354
        %574 = vmatmul.mubr.f32.gmra.mrb[0].mxu0 %v353
        %v575 = vpop.f32.mrb[0].mxu0
        %v576 = vadd.f32 %v430, %v575
        %v577 = vpop.f32.mrb[0].mxu0
        %v578 = vadd.f32 %v434, %v577
        %579 = vmatprep.mubr.f32.mxu0 %v356
        %580 = vmatmul.mubr.f32.gmra.mrb[0].mxu0 %v355
        %v581 = vpop.f32.mrb[0].mxu0
        %v582 = vadd.f32 %v430, %v581
        %v583 = vpop.f32.mrb[0].mxu0
        %v584 = vadd.f32 %v434, %v583
        %585 = vmatprep.mubr.f32.mxu0 %v358
        %586 = vmatmul.mubr.f32.gmra.mrb[0].mxu0 %v357
        %v587 = vpop.f32.mrb[0].mxu0
        %v588 = vadd.f32 %v430, %v587
        %v589 = vpop.f32.mrb[0].mxu0
        %v590 = vadd.f32 %v434, %v589
        %591 = vmatprep.mubr.f32.mxu0 %v360
        %592 = vmatmul.mubr.f32.gmra.mrb[0].mxu0 %v359
        %v593 = vpop.f32.mrb[0].mxu0
        %v594 = vadd.f32 %v430, %v593
        %v595 = vpop.f32.mrb[0].mxu0
        %v596 = vadd.f32 %v434, %v595
        %597 = vdwg.mxu0
        %v598 = vld [vmem:[%s292] sm:$0xff]
        %v599 = vld [vmem:[%s292 + $0x8] sm:$0xff]
        %v600 = vld [vmem:[%s292 + $0x10] sm:$0xff]
        %v601 = vld [vmem:[%s292 + $0x18] sm:$0xff]
        %v602 = vld [vmem:[%s292 + $0x20] sm:$0xff]
        %v603 = vld [vmem:[%s292 + $0x28] sm:$0xff]
        %v604 = vld [vmem:[%s292 + $0x30] sm:$0xff]
        %v605 = vld [vmem:[%s292 + $0x38] sm:$0xff]
        %v606 = vld [vmem:[%s292 + $0x40] sm:$0xff]
        %v607 = vld [vmem:[%s292 + $0x48] sm:$0xff]
        %v608 = vld [vmem:[%s292 + $0x50] sm:$0xff]
        %v609 = vld [vmem:[%s292 + $0x58] sm:$0xff]
        %v610 = vld [vmem:[%s292 + $0x60] sm:$0xff]
        %v611 = vld [vmem:[%s292 + $0x68] sm:$0xff]
        %v612 = vld [vmem:[%s292 + $0x70] sm:$0xff]
        %v613 = vld [vmem:[%s292 + $0x78] sm:$0xff]
        %v614 = vld [vmem:[%s292 + $0x80] sm:$0xff]
        %v615 = vld [vmem:[%s292 + $0x88] sm:$0xff]
        %v616 = vld [vmem:[%s292 + $0x90] sm:$0xff]
        %v617 = vld [vmem:[%s292 + $0x98] sm:$0xff]
        %v618 = vld [vmem:[%s292 + $0xa0] sm:$0xff]
        %v619 = vld [vmem:[%s292 + $0xa8] sm:$0xff]
        %v620 = vld [vmem:[%s292 + $0xb0] sm:$0xff]
        %v621 = vld [vmem:[%s292 + $0xb8] sm:$0xff]
        %v622 = vld [vmem:[%s292 + $0xc0] sm:$0xff]
        %v623 = vld [vmem:[%s292 + $0xc8] sm:$0xff]
        %v624 = vld [vmem:[%s292 + $0xd0] sm:$0xff]
        %v625 = vld [vmem:[%s292 + $0xd8] sm:$0xff]
        %v626 = vld [vmem:[%s292 + $0xe0] sm:$0xff]
        %v627 = vld [vmem:[%s292 + $0xe8] sm:$0xff]
        %v628 = vld [vmem:[%s292 + $0xf0] sm:$0xff]
        %v629 = vld [vmem:[%s292 + $0xf8] sm:$0xff]
        %v630 = vadd.f32 %v504, %v598
        %v631 = vadd.f32 %v506, %v599
        %v632 = vadd.f32 %v510, %v600
        %v633 = vadd.f32 %v512, %v601
        %v634 = vadd.f32 %v516, %v602
        %v635 = vadd.f32 %v518, %v603
        %v636 = vadd.f32 %v522, %v604
        %v637 = vadd.f32 %v524, %v605
        %v638 = vadd.f32 %v528, %v606
        %v639 = vadd.f32 %v530, %v607
        %v640 = vadd.f32 %v534, %v608
        %v641 = vadd.f32 %v536, %v609
        %v642 = vadd.f32 %v540, %v610
        %v643 = vadd.f32 %v542, %v611
        %v644 = vadd.f32 %v546, %v612
        %v645 = vadd.f32 %v548, %v613
        %v646 = vadd.f32 %v552, %v614
        %v647 = vadd.f32 %v554, %v615
        %v648 = vadd.f32 %v558, %v616
        %v649 = vadd.f32 %v560, %v617
        %v650 = vadd.f32 %v564, %v618
        %v651 = vadd.f32 %v566, %v619
        %v652 = vadd.f32 %v570, %v620
        %v653 = vadd.f32 %v572, %v621
        %v654 = vadd.f32 %v576, %v622
        %v655 = vadd.f32 %v578, %v623
        %v656 = vadd.f32 %v582, %v624
        %v657 = vadd.f32 %v584, %v625
        %v658 = vadd.f32 %v588, %v626
        %v659 = vadd.f32 %v590, %v627
        %v660 = vadd.f32 %v594, %v628
        %v661 = vadd.f32 %v596, %v629
        %v662 = vadd.f32 %v630, %v631
        %663 = vadd.xlane.f32.xlu0 %v662
        %v664 = vpop.xlane.xlu0 %663
        %v665 = vadd.f32 %v632, %v633
        %666 = vadd.xlane.f32.xlu0 %v665
        %v667 = vpop.xlane.xlu0 %666
        %v668 = vadd.f32 %v634, %v635
        %669 = vadd.xlane.f32.xlu0 %v668
        %v670 = vpop.xlane.xlu0 %669
        %v671 = vadd.f32 %v636, %v637
        %672 = vadd.xlane.f32.xlu0 %v671
        %v673 = vpop.xlane.xlu0 %672
        %v674 = vadd.f32 %v638, %v639
        %675 = vadd.xlane.f32.xlu0 %v674
        %v676 = vpop.xlane.xlu0 %675
        %v677 = vadd.f32 %v640, %v641
        %678 = vadd.xlane.f32.xlu0 %v677
        %v679 = vpop.xlane.xlu0 %678
        %v680 = vadd.f32 %v642, %v643
        %681 = vadd.xlane.f32.xlu0 %v680
        %v682 = vpop.xlane.xlu0 %681
        %v683 = vadd.f32 %v644, %v645
        %684 = vadd.xlane.f32.xlu0 %v683
        %v685 = vpop.xlane.xlu0 %684
        %v686 = vadd.f32 %v646, %v647
        %687 = vadd.xlane.f32.xlu0 %v686
        %v688 = vpop.xlane.xlu0 %687
        %v689 = vadd.f32 %v648, %v649
        %690 = vadd.xlane.f32.xlu0 %v689
        %v691 = vpop.xlane.xlu0 %690
        %v692 = vadd.f32 %v650, %v651
        %693 = vadd.xlane.f32.xlu0 %v692
        %v694 = vpop.xlane.xlu0 %693
        %v695 = vadd.f32 %v652, %v653
        %696 = vadd.xlane.f32.xlu0 %v695
        %v697 = vpop.xlane.xlu0 %696
        %v698 = vadd.f32 %v654, %v655
        %699 = vadd.xlane.f32.xlu0 %v698
        %v700 = vpop.xlane.xlu0 %699
        %v701 = vadd.f32 %v656, %v657
        %702 = vadd.xlane.f32.xlu0 %v701
        %v703 = vpop.xlane.xlu0 %702
        %v704 = vadd.f32 %v658, %v659
        %705 = vadd.xlane.f32.xlu0 %v704
        %v706 = vpop.xlane.xlu0 %705
        %v707 = vadd.f32 %v660, %v661
        %708 = vadd.xlane.f32.xlu0 %v707
        %v709 = vpop.xlane.xlu0 %708
        %v710 = vrcp.pop 256.0
        %v711 = vmul.f32 %v664, %v710
        %v712 = vmul.f32 %v667, %v710
        %v713 = vmul.f32 %v670, %v710
        %v714 = vmul.f32 %v673, %v710
        %v715 = vmul.f32 %v676, %v710
        %v716 = vmul.f32 %v679, %v710
        %v717 = vmul.f32 %v682, %v710
        %v718 = vmul.f32 %v685, %v710
        %v719 = vmul.f32 %v688, %v710
        %v720 = vmul.f32 %v691, %v710
        %v721 = vmul.f32 %v694, %v710
        %v722 = vmul.f32 %v697, %v710
        %v723 = vmul.f32 %v700, %v710
        %v724 = vmul.f32 %v703, %v710
        %v725 = vmul.f32 %v706, %v710
        %v726 = vmul.f32 %v709, %v710
        %v727 = vsub.f32 %v630, %v711
        %v728 = vsub.f32 %v631, %v711
        %v729 = vsub.f32 %v632, %v712
        %v730 = vsub.f32 %v633, %v712
        %v731 = vsub.f32 %v634, %v713
        %v732 = vsub.f32 %v635, %v713
        %v733 = vsub.f32 %v636, %v714
        %v734 = vsub.f32 %v637, %v714
        %v735 = vsub.f32 %v638, %v715
        %v736 = vsub.f32 %v639, %v715
        %v737 = vsub.f32 %v640, %v716
        %v738 = vsub.f32 %v641, %v716
        %v739 = vsub.f32 %v642, %v717
        %v740 = vsub.f32 %v643, %v717
        %v741 = vsub.f32 %v644, %v718
        %v742 = vsub.f32 %v645, %v718
        %v743 = vsub.f32 %v646, %v719
        %v744 = vsub.f32 %v647, %v719
        %v745 = vsub.f32 %v648, %v720
        %v746 = vsub.f32 %v649, %v720
        %v747 = vsub.f32 %v650, %v721
        %v748 = vsub.f32 %v651, %v721
        %v749 = vsub.f32 %v652, %v722
        %v750 = vsub.f32 %v653, %v722
        %v751 = vsub.f32 %v654, %v723
        %v752 = vsub.f32 %v655, %v723
        %v753 = vsub.f32 %v656, %v724
        %v754 = vsub.f32 %v657, %v724
        %v755 = vsub.f32 %v658, %v725
        %v756 = vsub.f32 %v659, %v725
        %v757 = vsub.f32 %v660, %v726
        %v758 = vsub.f32 %v661, %v726
        %v759 = vmul.f32 %v727, %v727
        %v760 = vmul.f32 %v728, %v728
        %v761 = vmul.f32 %v729, %v729
        %v762 = vmul.f32 %v730, %v730
        %v763 = vmul.f32 %v731, %v731
        %v764 = vmul.f32 %v732, %v732
        %v765 = vmul.f32 %v733, %v733
        %v766 = vmul.f32 %v734, %v734
        %v767 = vmul.f32 %v735, %v735
        %v768 = vmul.f32 %v736, %v736
        %v769 = vmul.f32 %v737, %v737
        %v770 = vmul.f32 %v738, %v738
        %v771 = vmul.f32 %v739, %v739
        %v772 = vmul.f32 %v740, %v740
        %v773 = vmul.f32 %v741, %v741
        %v774 = vmul.f32 %v742, %v742
        %v775 = vmul.f32 %v743, %v743
        %v776 = vmul.f32 %v744, %v744
        %v777 = vmul.f32 %v745, %v745
        %v778 = vmul.f32 %v746, %v746
        %v779 = vmul.f32 %v747, %v747
        %v780 = vmul.f32 %v748, %v748
        %v781 = vmul.f32 %v749, %v749
        %v782 = vmul.f32 %v750, %v750
        %v783 = vmul.f32 %v751, %v751
        %v784 = vmul.f32 %v752, %v752
        %v785 = vmul.f32 %v753, %v753
        %v786 = vmul.f32 %v754, %v754
        %v787 = vmul.f32 %v755, %v755
        %v788 = vmul.f32 %v756, %v756
        %v789 = vmul.f32 %v757, %v757
        %v790 = vmul.f32 %v758, %v758
        %v791 = vadd.f32 %v759, %v760
        %792 = vadd.xlane.f32.xlu0 %v791
        %v793 = vpop.xlane.xlu0 %792
        %v794 = vadd.f32 %v761, %v762
        %795 = vadd.xlane.f32.xlu0 %v794
        %v796 = vpop.xlane.xlu0 %795
        %v797 = vadd.f32 %v763, %v764
        %798 = vadd.xlane.f32.xlu0 %v797
        %v799 = vpop.xlane.xlu0 %798
        %v800 = vadd.f32 %v765, %v766
        %801 = vadd.xlane.f32.xlu0 %v800
        %v802 = vpop.xlane.xlu0 %801
        %v803 = vadd.f32 %v767, %v768
        %804 = vadd.xlane.f32.xlu0 %v803
        %v805 = vpop.xlane.xlu0 %804
        %v806 = vadd.f32 %v769, %v770
        %807 = vadd.xlane.f32.xlu0 %v806
        %v808 = vpop.xlane.xlu0 %807
        %v809 = vadd.f32 %v771, %v772
        %810 = vadd.xlane.f32.xlu0 %v809
        %v811 = vpop.xlane.xlu0 %810
        %v812 = vadd.f32 %v773, %v774
        %813 = vadd.xlane.f32.xlu0 %v812
        %v814 = vpop.xlane.xlu0 %813
        %v815 = vadd.f32 %v775, %v776
        %816 = vadd.xlane.f32.xlu0 %v815
        %v817 = vpop.xlane.xlu0 %816
        %v818 = vadd.f32 %v777, %v778
        %819 = vadd.xlane.f32.xlu0 %v818
        %v820 = vpop.xlane.xlu0 %819
        %v821 = vadd.f32 %v779, %v780
        %822 = vadd.xlane.f32.xlu0 %v821
        %v823 = vpop.xlane.xlu0 %822
        %v824 = vadd.f32 %v781, %v782
        %825 = vadd.xlane.f32.xlu0 %v824
        %v826 = vpop.xlane.xlu0 %825
        %v827 = vadd.f32 %v783, %v784
        %828 = vadd.xlane.f32.xlu0 %v827
        %v829 = vpop.xlane.xlu0 %828
        %v830 = vadd.f32 %v785, %v786
        %831 = vadd.xlane.f32.xlu0 %v830
        %v832 = vpop.xlane.xlu0 %831
        %v833 = vadd.f32 %v787, %v788
        %834 = vadd.xlane.f32.xlu0 %v833
        %v835 = vpop.xlane.xlu0 %834
        %v836 = vadd.f32 %v789, %v790
        %837 = vadd.xlane.f32.xlu0 %v836
        %v838 = vpop.xlane.xlu0 %837
        %v839 = vmul.f32 %v793, %v710
        %v840 = vmul.f32 %v796, %v710
        %v841 = vmul.f32 %v799, %v710
        %v842 = vmul.f32 %v802, %v710
        %v843 = vmul.f32 %v805, %v710
        %v844 = vmul.f32 %v808, %v710
        %v845 = vmul.f32 %v811, %v710
        %v846 = vmul.f32 %v814, %v710
        %v847 = vmul.f32 %v817, %v710
        %v848 = vmul.f32 %v820, %v710
        %v849 = vmul.f32 %v823, %v710
        %v850 = vmul.f32 %v826, %v710
        %v851 = vmul.f32 %v829, %v710
        %v852 = vmul.f32 %v832, %v710
        %v853 = vmul.f32 %v835, %v710
        %v854 = vmul.f32 %v838, %v710
        %v855 = vadd.f32 %v839, 1e-12
        %v856 = vadd.f32 %v840, 1e-12
        %v857 = vadd.f32 %v841, 1e-12
        %v858 = vadd.f32 %v842, 1e-12
        %v859 = vadd.f32 %v843, 1e-12
        %v860 = vadd.f32 %v844, 1e-12
        %v861 = vadd.f32 %v845, 1e-12
        %v862 = vadd.f32 %v846, 1e-12
        %v863 = vadd.f32 %v847, 1e-12
        %v864 = vadd.f32 %v848, 1e-12
        %v865 = vadd.f32 %v849, 1e-12
        %v866 = vadd.f32 %v850, 1e-12
        %v867 = vadd.f32 %v851, 1e-12
        %v868 = vadd.f32 %v852, 1e-12
        %v869 = vadd.f32 %v853, 1e-12
        %v870 = vadd.f32 %v854, 1e-12
        %v871 = vrsqrt.pop %v855
        %v872 = vrsqrt.pop %v856
        %v873 = vrsqrt.pop %v857
        %v874 = vrsqrt.pop %v858
        %v875 = vrsqrt.pop %v859
        %v876 = vrsqrt.pop %v860
        %v877 = vrsqrt.pop %v861
        %v878 = vrsqrt.pop %v862
        %v879 = vrsqrt.pop %v863
        %v880 = vrsqrt.pop %v864
        %v881 = vrsqrt.pop %v865
        %v882 = vrsqrt.pop %v866
        %v883 = vrsqrt.pop %v867
        %v884 = vrsqrt.pop %v868
        %v885 = vrsqrt.pop %v869
        %v886 = vrsqrt.pop %v870
        %v887 = vmul.f32 %v727, %v871
        %v888 = vmul.f32 %v728, %v871
        %v889 = vmul.f32 %v729, %v872
        %v890 = vmul.f32 %v730, %v872
        %v891 = vmul.f32 %v731, %v873
        %v892 = vmul.f32 %v732, %v873
        %v893 = vmul.f32 %v733, %v874
        %v894 = vmul.f32 %v734, %v874
        %v895 = vmul.f32 %v735, %v875
        %v896 = vmul.f32 %v736, %v875
        %v897 = vmul.f32 %v737, %v876
        %v898 = vmul.f32 %v738, %v876
        %v899 = vmul.f32 %v739, %v877
        %v900 = vmul.f32 %v740, %v877
        %v901 = vmul.f32 %v741, %v878
        %v902 = vmul.f32 %v742, %v878
        %v903 = vmul.f32 %v743, %v879
        %v904 = vmul.f32 %v744, %v879
        %v905 = vmul.f32 %v745, %v880
        %v906 = vmul.f32 %v746, %v880
        %v907 = vmul.f32 %v747, %v881
        %v908 = vmul.f32 %v748, %v881
        %v909 = vmul.f32 %v749, %v882
        %v910 = vmul.f32 %v750, %v882
        %v911 = vmul.f32 %v751, %v883
        %v912 = vmul.f32 %v752, %v883
        %v913 = vmul.f32 %v753, %v884
        %v914 = vmul.f32 %v754, %v884
        %v915 = vmul.f32 %v755, %v885
        %v916 = vmul.f32 %v756, %v885
        %v917 = vmul.f32 %v757, %v886
        %v918 = vmul.f32 %v758, %v886
        %v919 = vld [vmem:[%s5] sm:$0x3]
        %v921 = vlaneseq
        %v922 = vshrl.u32 %v921, 7
        %v923 = vsub.s32 0, %v922
        %v924 = vrot.slane %v919, %v923
        %v925 = vlaneseq
        %v926 = vshrl.u32 %v925, 7
        %v927 = vsub.s32 1, %v926
        %v928 = vrot.slane %v919, %v927
        %v931 = vmul.f32 %v887, %v924
        %v932 = vmul.f32 %v888, %v928
        %v933 = vmul.f32 %v889, %v924
        %v934 = vmul.f32 %v890, %v928
        %v935 = vmul.f32 %v891, %v924
        %v936 = vmul.f32 %v892, %v928
        %v937 = vmul.f32 %v893, %v924
        %v938 = vmul.f32 %v894, %v928
        %v939 = vmul.f32 %v895, %v924
        %v940 = vmul.f32 %v896, %v928
        %v941 = vmul.f32 %v897, %v924
        %v942 = vmul.f32 %v898, %v928
        %v943 = vmul.f32 %v899, %v924
        %v944 = vmul.f32 %v900, %v928
        %v945 = vmul.f32 %v901, %v924
        %v946 = vmul.f32 %v902, %v928
        %v947 = vmul.f32 %v903, %v924
        %v948 = vmul.f32 %v904, %v928
        %v949 = vmul.f32 %v905, %v924
        %v950 = vmul.f32 %v906, %v928
        %v951 = vmul.f32 %v907, %v924
        %v952 = vmul.f32 %v908, %v928
        %v953 = vmul.f32 %v909, %v924
        %v954 = vmul.f32 %v910, %v928
        %v955 = vmul.f32 %v911, %v924
        %v956 = vmul.f32 %v912, %v928
        %v957 = vmul.f32 %v913, %v924
        %v958 = vmul.f32 %v914, %v928
        %v959 = vmul.f32 %v915, %v924
        %v960 = vmul.f32 %v916, %v928
        %v961 = vmul.f32 %v917, %v924
        %v962 = vmul.f32 %v918, %v928
        %v963 = vld [vmem:[%s6] sm:$0x3]
        %v965 = vlaneseq
        %v966 = vshrl.u32 %v965, 7
        %v967 = vsub.s32 0, %v966
        %v968 = vrot.slane %v963, %v967
        %v969 = vlaneseq
        %v970 = vshrl.u32 %v969, 7
        %v971 = vsub.s32 1, %v970
        %v972 = vrot.slane %v963, %v971
        %v975 = vadd.f32 %v931, %v968
        %v976 = vadd.f32 %v932, %v972
        %v977 = vadd.f32 %v933, %v968
        %v978 = vadd.f32 %v934, %v972
        %v979 = vadd.f32 %v935, %v968
        %v980 = vadd.f32 %v936, %v972
        %v981 = vadd.f32 %v937, %v968
        %v982 = vadd.f32 %v938, %v972
        %v983 = vadd.f32 %v939, %v968
        %v984 = vadd.f32 %v940, %v972
        %v985 = vadd.f32 %v941, %v968
        %v986 = vadd.f32 %v942, %v972
        %v987 = vadd.f32 %v943, %v968
        %v988 = vadd.f32 %v944, %v972
        %v989 = vadd.f32 %v945, %v968
        %v990 = vadd.f32 %v946, %v972
        %v991 = vadd.f32 %v947, %v968
        %v992 = vadd.f32 %v948, %v972
        %v993 = vadd.f32 %v949, %v968
        %v994 = vadd.f32 %v950, %v972
        %v995 = vadd.f32 %v951, %v968
        %v996 = vadd.f32 %v952, %v972
        %v997 = vadd.f32 %v953, %v968
        %v998 = vadd.f32 %v954, %v972
        %v999 = vadd.f32 %v955, %v968
        %v1000 = vadd.f32 %v956, %v972
        %v1001 = vadd.f32 %v957, %v968
        %v1002 = vadd.f32 %v958, %v972
        %v1003 = vadd.f32 %v959, %v968
        %v1004 = vadd.f32 %v960, %v972
        %v1005 = vadd.f32 %v961, %v968
        %v1006 = vadd.f32 %v962, %v972
        %1007 = vst [vmem:[%s325] sm:$0xff] %v975
        %1008 = vst [vmem:[%s325 + $0x8] sm:$0xff] %v976
        %1009 = vst [vmem:[%s325 + $0x10] sm:$0xff] %v977
        %1010 = vst [vmem:[%s325 + $0x18] sm:$0xff] %v978
        %1011 = vst [vmem:[%s325 + $0x20] sm:$0xff] %v979
        %1012 = vst [vmem:[%s325 + $0x28] sm:$0xff] %v980
        %1013 = vst [vmem:[%s325 + $0x30] sm:$0xff] %v981
        %1014 = vst [vmem:[%s325 + $0x38] sm:$0xff] %v982
        %1015 = vst [vmem:[%s325 + $0x40] sm:$0xff] %v983
        %1016 = vst [vmem:[%s325 + $0x48] sm:$0xff] %v984
        %1017 = vst [vmem:[%s325 + $0x50] sm:$0xff] %v985
        %1018 = vst [vmem:[%s325 + $0x58] sm:$0xff] %v986
        %1019 = vst [vmem:[%s325 + $0x60] sm:$0xff] %v987
        %1020 = vst [vmem:[%s325 + $0x68] sm:$0xff] %v988
        %1021 = vst [vmem:[%s325 + $0x70] sm:$0xff] %v989
        %1022 = vst [vmem:[%s325 + $0x78] sm:$0xff] %v990
        %1023 = vst [vmem:[%s325 + $0x80] sm:$0xff] %v991
        %1024 = vst [vmem:[%s325 + $0x88] sm:$0xff] %v992
        %1025 = vst [vmem:[%s325 + $0x90] sm:$0xff] %v993
        %1026 = vst [vmem:[%s325 + $0x98] sm:$0xff] %v994
        %1027 = vst [vmem:[%s325 + $0xa0] sm:$0xff] %v995
        %1028 = vst [vmem:[%s325 + $0xa8] sm:$0xff] %v996
        %1029 = vst [vmem:[%s325 + $0xb0] sm:$0xff] %v997
        %1030 = vst [vmem:[%s325 + $0xb8] sm:$0xff] %v998
        %1031 = vst [vmem:[%s325 + $0xc0] sm:$0xff] %v999
        %1032 = vst [vmem:[%s325 + $0xc8] sm:$0xff] %v1000
        %1033 = vst [vmem:[%s325 + $0xd0] sm:$0xff] %v1001
        %1034 = vst [vmem:[%s325 + $0xd8] sm:$0xff] %v1002
        %1035 = vst [vmem:[%s325 + $0xe0] sm:$0xff] %v1003
        %1036 = vst [vmem:[%s325 + $0xe8] sm:$0xff] %v1004
        %1037 = vst [vmem:[%s325 + $0xf0] sm:$0xff] %v1005
        %1038 = vst [vmem:[%s325 + $0xf8] sm:$0xff] %v1006
        %s1039 = sand.u32 %s170, 1
        %s1040 = scalar_lea.sflag [#allocation6], %s1039
        %s1041 = sand.u32 %s170, 1
        %s1042 = smul.addr %s1041, 256
        %s1043 = scalar_lea.vmem [#allocation10], %s1042
        // Predicated region
        $region57: #{tpu_custom_call.1} parent=43 // pred_check
          %p1044 = pneg %p180
        $region58: #{tpu_custom_call.1} parent=43 // pred_check_branch
          %1046 = sbr.rel (%p1044) target = $region60
        $region59: #{tpu_custom_call.1} parent=43 // pred_region
          %s1047 = smul.u32 16, %s26
          %s1049 = ssub.s32 4096, 4096
          %1050 = vsyncadd %s1040, %s1049
          %s1051 = smul.addr %s1047, 2
          %s1052 = smul.addr %s1051, 128
          %s1053 = scalar_lea.hbm %s7, %s1052
          %s1054 = sshll.u32 %s1043, 4
          %s1055 = int_to_ptr.vmem [resolvable:$true] %s1054
          %1060 = dma.vmem_to_hbm [thread:$0]  %s1055, 4096, %s1053, %s1040, 256, 256, 16
        $region60: #{tpu_custom_call.1} parent=43 // pred_fallthru
          _
      $region44: #{tpu_custom_call.1} parent=5 // pred_fallthru
        _
      %p1061 = scmp.le.s32.totalorder 2, %s21
      // Predicated region
      $region61: #{tpu_custom_call.1} parent=5 // pred_check
        %p1062 = pneg %p1061
      $region62: #{tpu_custom_call.1} parent=5 // pred_check_branch
        %1064 = sbr.rel (%p1062) target = $region64
      $region63: #{tpu_custom_call.1} parent=5 // pred_region
        %s1065 = ssub.s32 %s21, 2
        // Predicated region
        $region65: #{tpu_custom_call.1} parent=63 // pred_check
          %p1066 = pneg %p186
        $region66: #{tpu_custom_call.1} parent=63 // pred_check_branch
          %1068 = sbr.rel (%p1066) target = $region68
        $region67: #{tpu_custom_call.1} parent=63 // pred_region
          %s1069 = sand.u32 %s171, 1
          %s1070 = scalar_lea.sflag [#allocation6], %s1069
          %s1071 = sand.u32 %s171, 1
          %s1072 = smul.addr %s1071, 256
          %s1073 = scalar_lea.vmem [#allocation10], %s1072
          %1074 = dma.done %s1070, 4096
        $region68: #{tpu_custom_call.1} parent=63 // pred_fallthru
          _
      $region64: #{tpu_custom_call.1} parent=5 // pred_fallthru
        _
    $region6: #{tpu_custom_call.1} parent=1 // loop_footer
      %s25 = sadd.s32 1, %s21
    $region7: #{tpu_custom_call.1} parent=1 // loop_footer_branch
      %20 = sbr.rel target = $region3
    $region8: #{tpu_custom_call.1} parent=1 // loop_exit
      _
    %1075 = vsyncpa [#allocation5], 1
    %s1076 = scalar_lea.sflag [#allocation5], 1
    %1077 = vsyncpa %s1076, 1
    %1078 = vsyncpa [#allocation8], 1
    %1079 = vsyncpa [#allocation6], 1
    %s1080 = scalar_lea.sflag [#allocation6], 1
    %1081 = vsyncpa %s1080, 1

</llo_original>
